<compile_context>
chip_gen: v7x
topology: tpu7x:2x2x1
jax: 0.10.0
libtpu: 0.0.40
codegen_flags: <defaults>
</compile_context>

<pallas_src>
import functools

import jax
import jax.numpy as jnp
from jax import lax
from jax.experimental import pallas as pl
from jax.experimental.pallas import tpu as pltpu

LANES = 128
MAX_BLOCK_ROWS = 4096   # 4096 x 128 f32 = 2 MiB per input tile


def _cdiv(a, b):
    return -(-a // b)


def _round_up(x, m):
    return ((x + m - 1) // m) * m


def _detect_num_cores():
    # Engage the 2-TensorCore split only on v7x-class chips; v5e/v6e expose a
    # single TensorCore per Pallas device, where the extra axis would only add
    # grid steps / padding.
    try:
        kind = jax.devices()[0].device_kind.lower()
    except Exception:
        return 1
    return 2 if ("v7" in kind or kind.startswith("tpu7")) else 1


def _group_tail_sum(pt, q):
    """Lane (g*q + q - 1) of the result holds sum of lanes [g*q, g*q+q) of pt."""
    if q == 1:
        return pt
    if q & (q - 1) == 0:                       # power of two -> log-step rolls
        s = pt
        shift = 1
        while shift < q:
            s = s + pltpu.roll(s, shift, axis=1)
            shift *= 2
        return s
    s = pt                                      # generic fallback
    for k in range(1, q):
        s = s + pltpu.roll(pt, k, axis=1)
    return s


def _rotation_loss_kernel(p_ref, t_ref, o_ref, *, q, total, block_rows,
                          tiles_per_core):
    c = pl.program_id(0)
    t = pl.program_id(1)

    @pl.when(t == 0)
    def _init():
        o_ref[...] = jnp.zeros_like(o_ref)

    # Native-dtype DMA; upcast on the VPU (hidden under the DMA).
    pt = p_ref[...].astype(jnp.float32) * t_ref[...].astype(jnp.float32)

    # Per-quaternion dot product lands on the tail lane of each q-lane group.
    s = _group_tail_sum(pt, q)

    # 1 - |clamp(dot, -1, 1)|  ==  max(1 - |dot|, 0)
    loss = jnp.maximum(1.0 - jnp.abs(s), 0.0)

    # Logical (un-clamped) block id drives the bound handling.
    block_id = c * tiles_per_core + t
    block_end_row = (block_id + 1) * block_rows
    full_rows = total // LANES          # rows that are entirely valid
    rem = total % LANES                 # valid lanes in the (single) partial row

    # Fast path: every element of this block is valid -> plain row-sum.
    @pl.when(block_end_row <= full_rows)
    def _full_tile():
        o_ref[...] += loss.sum(axis=0, keepdims=True)[None]

    # Edge path (the one ragged block plus any clamped re-read blocks):
    # select-out out-of-bounds rows/lanes.  A select (not a 0/1 multiply) so
    # stale NaN/Inf in the clipped tail cannot poison the accumulator.
    @pl.when(block_end_row > full_rows)
    def _edge_tile():
        base_row = block_id * block_rows
        row_g = base_row + lax.broadcasted_iota(jnp.int32, (block_rows, LANES), 0)
        lane = lax.broadcasted_iota(jnp.int32, (block_rows, LANES), 1)
        keep = (row_g < full_rows) | ((row_g == full_rows) & (lane < rem))
        o_ref[...] += jnp.where(keep, loss, 0.0).sum(axis=0, keepdims=True)[None]


def rotation_loss(pred_rotations, targ_rotations, valid=None,
                  sample_weight=None, loss_weight=5.0):
    """Pallas implementation of RotationLoss.forward. Returns a scalar f32."""
    B, N, Q = pred_rotations.shape
    assert targ_rotations.shape == (B, N, Q)
    assert LANES % Q == 0, "quaternion dim must divide the 128-lane width"

    total = B * N * Q
    rows = _cdiv(total, LANES)

    # Free reshape to a lane-dense (rows, 128) slab in the *native* dtype.
    # Pad only the <=127-element ragged tail (no full-array pad, no upcast).
    p = pred_rotations.reshape(-1)
    t = targ_rotations.reshape(-1)
    tail = rows * LANES - total
    if tail:
        p = jnp.pad(p, (0, tail))
        t = jnp.pad(t, (0, tail))
    p = p.reshape(rows, LANES)
    t = t.reshape(rows, LANES)

    # Tiling: multiple-of-8 row blocks; the ragged edge block is handled
    # in-kernel, so no whole-tile zero padding is ever DMA'd.
    num_cores = _detect_num_cores()
    if rows >= 8:
        target = _cdiv(rows, num_cores * 2)
        block_rows = min(MAX_BLOCK_ROWS, max(8, _round_up(target, 8)))
    else:
        block_rows = rows                    # tiny input: single full-dim block
    num_blocks = _cdiv(rows, block_rows)
    num_cores = min(num_cores, num_blocks)
    tiles_per_core = _cdiv(num_blocks, num_cores)
    max_block = num_blocks - 1

    def in_map(c, i):
        # Clamp so over-provisioned grid steps re-read a valid block; their
        # contribution is zeroed in-kernel via the logical-block bound mask.
        return (jnp.minimum(c * tiles_per_core + i, max_block), 0)

    core_sem = pltpu.CORE_PARALLEL if num_cores > 1 else pltpu.ARBITRARY

    kernel = functools.partial(_rotation_loss_kernel, q=Q, total=total,
                               block_rows=block_rows,
                               tiles_per_core=tiles_per_core)

    partials = pl.pallas_call(
        kernel,
        out_shape=jax.ShapeDtypeStruct((num_cores, 1, LANES), jnp.float32),
        grid=(num_cores, tiles_per_core),
        in_specs=[
            pl.BlockSpec((block_rows, LANES), in_map),
            pl.BlockSpec((block_rows, LANES), in_map),
        ],
        out_specs=pl.BlockSpec((1, 1, LANES), lambda c, i: (c, 0, 0)),
        compiler_params=pltpu.CompilerParams(
            dimension_semantics=(core_sem, pltpu.ARBITRARY)),
    )(p, t)

    # Only group-tail lanes of the per-lane partials hold real quaternion
    # losses; the lane mask is applied once here (hoisted out of the kernel).
    lane = jnp.arange(LANES)
    lane_sums = partials.sum(axis=(0, 1))                        # (128,)
    total_loss = jnp.where((lane % Q) == (Q - 1), lane_sums, 0.0).sum()

    # loss.sum(-1).mean() * loss_weight  ==  total_sum * loss_weight / B
    return total_loss * (float(loss_weight) / float(B))


def rotation_loss_reference(pred, targ, loss_weight=5.0):
    dot = jnp.sum(pred.astype(jnp.float32) * targ.astype(jnp.float32), axis=-1)
    dot = jnp.clip(dot, -1.0, 1.0)
    loss = 1.0 - jnp.abs(dot)
    return loss.sum(-1).mean() * loss_weight


if __name__ == "__main__":
    key = jax.random.PRNGKey(0)
    k1, k2 = jax.random.split(key)

    B, N, Q = 2, 16, 4  # batch, rotations per sample, quaternion dims
    pred = jax.random.normal(k1, (B, N, Q), dtype=jnp.float32)
    targ = jax.random.normal(k2, (B, N, Q), dtype=jnp.float32)

    out = rotation_loss(pred, targ)
    out = jax.block_until_ready(out)

    ref = rotation_loss_reference(pred, targ)
    assert jnp.allclose(out, ref, rtol=1e-5, atol=1e-5), (out, ref)

    print("KERNEL_OK")
</pallas_src>

<mosaic_0001>
module attributes {stable_mosaic.version = 11 : i64} {
  func.func @_rotation_loss_kernel(%arg0: i32, %arg1: i32, %arg2: memref<1x128xf32, #tpu.memory_space<vmem>>, %arg3: memref<1x128xf32, #tpu.memory_space<vmem>>, %arg4: memref<1x1x128xf32, #tpu.memory_space<vmem>>) attributes {dimension_semantics = [#tpu.dimension_semantics<arbitrary>, #tpu.dimension_semantics<arbitrary>], iteration_bounds = array<i64: 1, 1>, scalar_prefetch = 0 : i64, scratch_operands = 0 : i64, tpu.core_type = #tpu.core_type<tc>, window_params = [{transform_indices = @transform_0, window_bounds = array<i64: 1, 128>}, {transform_indices = @transform_1, window_bounds = array<i64: 1, 128>}, {transform_indices = @transform_2, window_bounds = array<i64: 1, 1, 128>}]} {
    %c0_i32 = arith.constant 0 : i32
    %0 = arith.cmpi eq, %arg1, %c0_i32 : i32
    %1 = arith.extui %0 : i1 to i32
    %c0_i32_0 = arith.constant 0 : i32
    %2 = arith.cmpi ne, %1, %c0_i32_0 : i32
    scf.if %2 {
      %cst_12 = arith.constant 0.000000e+00 : f32
      %25 = vector.broadcast %cst_12 : f32 to vector<1x1x128xf32>
      %c0_13 = arith.constant 0 : index
      %c0_14 = arith.constant 0 : index
      %c0_15 = arith.constant 0 : index
      %26 = vector.load %arg4[%c0_13, %c0_14, %c0_15] : memref<1x1x128xf32, #tpu.memory_space<vmem>>, vector<1x1x128xf32>
      tpu.vector_store %arg4[%c0_13, %c0_14, %c0_15], %25 {strides = array<i32>} : memref<1x1x128xf32, #tpu.memory_space<vmem>>, vector<1x1x128xf32>,
    } else {
    }
    %c0 = arith.constant 0 : index
    %c0_1 = arith.constant 0 : index
    %3 = vector.load %arg2[%c0, %c0_1] : memref<1x128xf32, #tpu.memory_space<vmem>>, vector<1x128xf32>
    %c0_2 = arith.constant 0 : index
    %c0_3 = arith.constant 0 : index
    %4 = vector.load %arg3[%c0_2, %c0_3] : memref<1x128xf32, #tpu.memory_space<vmem>>, vector<1x128xf32>
    %5 = arith.mulf %3, %4 : vector<1x128xf32>
    %c1_i32 = arith.constant 1 : i32
    %6 = tpu.dynamic_rotate %5 by %c1_i32 dim 1 : vector<1x128xf32>, i32 -> vector<1x128xf32>
    %7 = arith.addf %5, %6 : vector<1x128xf32>
    %c2_i32 = arith.constant 2 : i32
    %8 = tpu.dynamic_rotate %7 by %c2_i32 dim 1 : vector<1x128xf32>, i32 -> vector<1x128xf32>
    %9 = arith.addf %7, %8 : vector<1x128xf32>
    %10 = math.absf %9 : vector<1x128xf32>
    %cst = arith.constant 1.000000e+00 : f32
    %11 = vector.broadcast %cst : f32 to vector<1x128xf32>
    %12 = arith.subf %11, %10 : vector<1x128xf32>
    %cst_4 = arith.constant 0.000000e+00 : f32
    %13 = vector.broadcast %cst_4 : f32 to vector<1x128xf32>
    %14 = arith.maximumf %12, %13 : vector<1x128xf32>
    %c1_i32_5 = arith.constant 1 : i32
    %15 = arith.muli %arg0, %c1_i32_5 : i32
    %16 = arith.addi %15, %arg1 : i32
    %c1_i32_6 = arith.constant 1 : i32
    %17 = arith.addi %16, %c1_i32_6 : i32
    %c1_i32_7 = arith.constant 1 : i32
    %18 = arith.muli %17, %c1_i32_7 : i32
    %c1_i32_8 = arith.constant 1 : i32
    %19 = arith.cmpi sle, %18, %c1_i32_8 : i32
    %20 = arith.extui %19 : i1 to i32
    %c0_i32_9 = arith.constant 0 : i32
    %21 = arith.cmpi ne, %20, %c0_i32_9 : i32
    scf.if %21 {
      %c0_12 = arith.constant 0 : index
      %c0_13 = arith.constant 0 : index
      %c0_14 = arith.constant 0 : index
      %25 = vector.load %arg4[%c0_12, %c0_13, %c0_14] : memref<1x1x128xf32, #tpu.memory_space<vmem>>, vector<1x1x128xf32>
      %cst_15 = arith.constant dense<0.000000e+00> : vector<128xf32>
      %26 = vector.multi_reduction <add>, %14, %cst_15 [0] : vector<1x128xf32> to vector<128xf32>
      %27 = vector.shape_cast %26 : vector<128xf32> to vector<1x128xf32>
      %28 = vector.shape_cast %27 : vector<1x128xf32> to vector<1x1x128xf32>
      %29 = arith.addf %25, %28 : vector<1x1x128xf32>
      %c0_16 = arith.constant 0 : index
      %c0_17 = arith.constant 0 : index
      %c0_18 = arith.constant 0 : index
      %30 = vector.load %arg4[%c0_16, %c0_17, %c0_18] : memref<1x1x128xf32, #tpu.memory_space<vmem>>, vector<1x1x128xf32>
      tpu.vector_store %arg4[%c0_16, %c0_17, %c0_18], %29 {strides = array<i32>} : memref<1x1x128xf32, #tpu.memory_space<vmem>>, vector<1x1x128xf32>,
    } else {
    }
    %c1_i32_10 = arith.constant 1 : i32
    %22 = arith.cmpi sgt, %18, %c1_i32_10 : i32
    %23 = arith.extui %22 : i1 to i32
    %c0_i32_11 = arith.constant 0 : i32
    %24 = arith.cmpi ne, %23, %c0_i32_11 : i32
    scf.if %24 {
      %c1_i32_12 = arith.constant 1 : i32
      %25 = arith.muli %16, %c1_i32_12 : i32
      %26 = tpu.iota {dimensions = array<i32: 0>} : vector<1x128xi32>
      %27 = vector.broadcast %25 : i32 to vector<1x128xi32>
      %28 = arith.addi %27, %26 : vector<1x128xi32>
      %29 = tpu.iota {dimensions = array<i32: 1>} : vector<1x128xi32>
      %c1_i32_13 = arith.constant 1 : i32
      %30 = vector.broadcast %c1_i32_13 : i32 to vector<1x128xi32>
      %31 = arith.cmpi slt, %28, %30 : vector<1x128xi32>
      %c1_i32_14 = arith.constant 1 : i32
      %32 = vector.broadcast %c1_i32_14 : i32 to vector<1x128xi32>
      %33 = arith.cmpi eq, %28, %32 : vector<1x128xi32>
      %c0_i32_15 = arith.constant 0 : i32
      %34 = vector.broadcast %c0_i32_15 : i32 to vector<1x128xi32>
      %35 = arith.cmpi slt, %29, %34 : vector<1x128xi32>
      %36 = arith.andi %33, %35 : vector<1x128xi1>
      %37 = arith.ori %31, %36 : vector<1x128xi1>
      %c0_16 = arith.constant 0 : index
      %c0_17 = arith.constant 0 : index
      %c0_18 = arith.constant 0 : index
      %38 = vector.load %arg4[%c0_16, %c0_17, %c0_18] : memref<1x1x128xf32, #tpu.memory_space<vmem>>, vector<1x1x128xf32>
      %cst_19 = arith.constant 0.000000e+00 : f32
      %39 = vector.broadcast %cst_19 : f32 to vector<1x128xf32>
      %40 = arith.select %37, %14, %39 : vector<1x128xi1>, vector<1x128xf32>
      %cst_20 = arith.constant dense<0.000000e+00> : vector<128xf32>
      %41 = vector.multi_reduction <add>, %40, %cst_20 [0] : vector<1x128xf32> to vector<128xf32>
      %42 = vector.shape_cast %41 : vector<128xf32> to vector<1x128xf32>
      %43 = vector.shape_cast %42 : vector<1x128xf32> to vector<1x1x128xf32>
      %44 = arith.addf %38, %43 : vector<1x1x128xf32>
      %c0_21 = arith.constant 0 : index
      %c0_22 = arith.constant 0 : index
      %c0_23 = arith.constant 0 : index
      %45 = vector.load %arg4[%c0_21, %c0_22, %c0_23] : memref<1x1x128xf32, #tpu.memory_space<vmem>>, vector<1x1x128xf32>
      tpu.vector_store %arg4[%c0_21, %c0_22, %c0_23], %44 {strides = array<i32>} : memref<1x1x128xf32, #tpu.memory_space<vmem>>, vector<1x1x128xf32>,
    } else {
    }
    return
  }
  func.func @transform_0(%arg0: i32, %arg1: i32) -> (i32, i32) {
    %c1_i32 = arith.constant 1 : i32
    %0 = arith.muli %arg0, %c1_i32 : i32
    %1 = arith.addi %0, %arg1 : i32
    %c0_i32 = arith.constant 0 : i32
    %2 = arith.minsi %1, %c0_i32 : i32
    %c0_i32_0 = arith.constant 0 : i32
    %c0_i32_1 = arith.constant 0 : i32
    return %2, %c0_i32_0 : i32, i32
  }
  func.func @transform_1(%arg0: i32, %arg1: i32) -> (i32, i32) {
    %c1_i32 = arith.constant 1 : i32
    %0 = arith.muli %arg0, %c1_i32 : i32
    %1 = arith.addi %0, %arg1 : i32
    %c0_i32 = arith.constant 0 : i32
    %2 = arith.minsi %1, %c0_i32 : i32
    %c0_i32_0 = arith.constant 0 : i32
    %c0_i32_1 = arith.constant 0 : i32
    return %2, %c0_i32_0 : i32, i32
  }
  func.func @transform_2(%arg0: i32, %arg1: i32) -> (i32, i32, i32) {
    %c0_i32 = arith.constant 0 : i32
    %c0_i32_0 = arith.constant 0 : i32
    %c0_i32_1 = arith.constant 0 : i32
    return %arg0, %c0_i32, %c0_i32_0 : i32, i32, i32
  }
}

</mosaic_0001>

<llo_original>
// kernel: tpu_custom_call.1
$region0: #{tpu_custom_call.1}
  #allocation0 [shape = 'u32[]', space=smem, size = 0x4, offset = 0x4, fixed_abs, tag = 'smem constant byte address 0x4 - core index']
  #allocation1 [shape = 'u32[144,128]{1,0:T(1,128)}', space=vmem, size = 0x12000, scoped, tag = 'internal scratch']
  %s0 = inlined_call_operand.hbm [shape: f32[1,128], index: 0, kind: input, shape index: {}]
  %s1 = inlined_call_operand.vmem [shape: f32[1,128], index: 1, kind: input, shape index: {}]
  %s2 = inlined_call_operand.hbm [shape: f32[1,1,128], index: 2, kind: output, shape index: {}]
  %s3 = sld [smem:[#allocation0]]
  $region34: #{tpu_custom_call.1} parent=0
    _
  %s5 = ssub.s32 1, %s3
  %s6 = scalar_select 0, %s5, %s3
  $region1: #{tpu_custom_call.1} parent=0
    #allocation2 [shape = 'u8[512]{0}', space=vmem, size = 0x400, scoped, tag = 'input window, operand 0, single buffered']
    #allocation3 [shape = 's32[1]{0}', space=sflag, size = 0x4, scoped, tag = 'scoped memory for tpu_custom_call.1']
    #allocation4 [shape = 's32[1]{0}', space=sflag, size = 0x4, scoped, tag = 'scoped memory for tpu_custom_call.1']
    #allocation5 [shape = 'u8[512]{0}', space=vmem, size = 0x400, scoped, tag = 'output window, operand 0, single buffered']
    %7 = vsyncpa [#allocation3], 0
    %8 = vsyncpa [#allocation4], 0
    // Predicated region
    $region2: #{tpu_custom_call.1} parent=1 // pred_check
      _
    $region3: #{tpu_custom_call.1} parent=1 // pred_check_branch
      %10 = sbr.rel (0) target = $region5
    $region4: #{tpu_custom_call.1} parent=1 // pred_region
      %s11 = sadd.s32 0, 0
      %p12 = scmp.lt.s32.totalorder %s11, 0
      %s13 = scalar_select %p12, %s11, 0
      %s15 = ssub.s32 16, 16
      %16 = vsyncadd [#allocation3], %s15
      %s17 = smul.addr %s13, 16
      %s18 = scalar_lea.hbm %s0, %s17
      %s20 = sshll.u32 [#allocation2], 4
      %s21 = int_to_ptr.vmem [resolvable:$true] %s20
      %23 = dma.hbm_to_vmem [thread:$0]  %s18, 16, %s21, [#allocation3]
    $region5: #{tpu_custom_call.1} parent=1 // pred_fallthru
      _
    // Predicated region
    $region6: #{tpu_custom_call.1} parent=1 // pred_check
      _
    $region7: #{tpu_custom_call.1} parent=1 // pred_check_branch
      %25 = sbr.rel (0) target = $region9
    $region8: #{tpu_custom_call.1} parent=1 // pred_region
      %s26 = sadd.s32 0, 0
      %p27 = scmp.lt.s32.totalorder %s26, 0
      %s28 = scalar_select %p27, %s26, 0
      %p29 = scmp.lt.s32.totalorder %s28, 0
      %s30 = scalar_select %p29, %s28, 0
      %s31 = scalar_lea.vmem %s1, %s30
      %s32 = sadd.s32 0, 0
      %p33 = scmp.lt.s32.totalorder %s32, 0
      %s34 = scalar_select %p33, %s32, 0
    $region9: #{tpu_custom_call.1} parent=1 // pred_fallthru
      _
    // Predicated region
    $region10: #{tpu_custom_call.1} parent=1 // pred_check
      _
    $region11: #{tpu_custom_call.1} parent=1 // pred_check_branch
      %36 = sbr.rel (0) target = $region13
    $region12: #{tpu_custom_call.1} parent=1 // pred_region
      %37 = dma.done [#allocation3], 16
    $region13: #{tpu_custom_call.1} parent=1 // pred_fallthru
      _
    %s38 = sadd.s32 0, 0
    %p39 = scmp.lt.s32.totalorder %s38, 0
    %s40 = scalar_select %p39, %s38, 0
    %p41 = scmp.lt.s32.totalorder %s40, 0
    %s42 = scalar_select %p41, %s40, 0
    %s43 = scalar_lea.vmem %s1, %s42
    %s44 = sadd.s32 0, 0
    %p45 = scmp.lt.s32.totalorder %s44, 0
    %s46 = scalar_select %p45, %s44, 0
    %s47 = sadd.s32 0, 0
    %p48 = scmp.lt.s32.totalorder %s47, 0
    %s49 = scalar_select %p48, %s47, 0
    %p50 = scmp.lt.s32.totalorder %s49, 0
    %s51 = scalar_select %p50, %s49, 0
    %s52 = scalar_lea.vmem %s1, %s51
    %s53 = sadd.s32 0, 0
    %p54 = scmp.lt.s32.totalorder %s53, 0
    %s55 = scalar_select %p54, %s53, 0
    %p56 = scmp.eq.s32.totalorder 0, 0
    // Predicated region
    $region14: #{tpu_custom_call.1} parent=1 // pred_check
      %p57 = pneg %p56
    $region15: #{tpu_custom_call.1} parent=1 // pred_check_branch
      %59 = sbr.rel (%p57) target = $region17
    $region16: #{tpu_custom_call.1} parent=1 // pred_region
      %60 = vst [vmem:[#allocation5] sm:$0x1] 0.0
    $region17: #{tpu_custom_call.1} parent=1 // pred_fallthru
      _
    %v61 = vld [vmem:[#allocation2] sm:$0x1]
    %v62 = vld [vmem:[%s52] sm:$0x1]
    %v63 = vmul.f32 %v61, %v62
    %64 = vrot.lane.b32.xlu0 %v63, 1
    %v65 = vpop.permute.xlu0 %64
    %v66 = vadd.f32 %v63, %v65
    %67 = vrot.lane.b32.xlu0 %v66, 2
    %v68 = vpop.permute.xlu0 %67
    %v69 = vadd.f32 %v66, %v68
    %v70 = vand.u32 2147483647, %v69
    %v71 = vsub.f32 1.0, %v70
    %v72 = vmax.f32 %v71, 0.0
    %s73 = sadd.s32 0, 0
    %s74 = sadd.s32 %s73, 1
    %p75 = scmp.le.s32.totalorder %s74, 1
    // Predicated region
    $region18: #{tpu_custom_call.1} parent=1 // pred_check
      %p76 = pneg %p75
    $region19: #{tpu_custom_call.1} parent=1 // pred_check_branch
      %78 = sbr.rel (%p76) target = $region21
    $region20: #{tpu_custom_call.1} parent=1 // pred_region
      %v79 = vld [vmem:[#allocation5] sm:$0x1]
      %v80 = vadd.f32 %v72, 0.0
      %v81 = vadd.f32 %v79, %v80
      %82 = vst [vmem:[#allocation5] sm:$0x1] %v81
    $region21: #{tpu_custom_call.1} parent=1 // pred_fallthru
      _
    %p83 = scmp.gt.s32.totalorder %s74, 1
    // Predicated region
    $region22: #{tpu_custom_call.1} parent=1 // pred_check
      %p84 = pneg %p83
    $region23: #{tpu_custom_call.1} parent=1 // pred_check_branch
      %86 = sbr.rel (%p84) target = $region25
    $region24: #{tpu_custom_call.1} parent=1 // pred_region
      %v87 = vlaneseq
      %v88 = vshrl.u32 %v87, 7
      %v89 = vstv %s73
      %v90 = vadd.s32 %v89, %v88
      %v91 = vlaneseq
      %v92 = vand.u32 %v91, 127
      %vm93 = vcmp.lt.s32.totalorder %v90, 1
      %vm94 = vcmp.eq.s32.totalorder %v90, 1
      %vm95 = vcmp.lt.s32.totalorder %v92, 0
      %vm96 = vmand %vm94, %vm95
      %vm97 = vmor %vm93, %vm96
      %v98 = vld [vmem:[#allocation5] sm:$0x1]
      %v99 = vsel %vm97, %v72, 0.0
      %v100 = vadd.f32 %v99, 0.0
      %v101 = vadd.f32 %v98, %v100
      %102 = vst [vmem:[#allocation5] sm:$0x1] %v101
    $region25: #{tpu_custom_call.1} parent=1 // pred_fallthru
      _
    // Predicated region
    $region26: #{tpu_custom_call.1} parent=1 // pred_check
      _
    $region27: #{tpu_custom_call.1} parent=1 // pred_check_branch
      %104 = sbr.rel (0) target = $region29
    $region28: #{tpu_custom_call.1} parent=1 // pred_region
      %s106 = ssub.s32 16, 16
      %107 = vsyncadd [#allocation4], %s106
      %s109 = sshll.u32 [#allocation5], 4
      %s110 = int_to_ptr.vmem [resolvable:$true] %s109
      %112 = dma.vmem_to_hbm [thread:$0]  %s110, 16, %s2, [#allocation4]
    $region29: #{tpu_custom_call.1} parent=1 // pred_fallthru
      _
    // Predicated region
    $region30: #{tpu_custom_call.1} parent=1 // pred_check
      _
    $region31: #{tpu_custom_call.1} parent=1 // pred_check_branch
      %114 = sbr.rel (0) target = $region33
    $region32: #{tpu_custom_call.1} parent=1 // pred_region
      %115 = dma.done [#allocation4], 16
    $region33: #{tpu_custom_call.1} parent=1 // pred_fallthru
      _
    %116 = vsyncpa [#allocation3], 1
    %117 = vsyncpa [#allocation4], 1

</llo_original>
